<compile_context>
chip_gen: v7x
topology: tpu7x:2x2x1
jax: 0.10.0
libtpu: 0.0.40
codegen_flags: <defaults>
</compile_context>

<pallas_src>
import functools

import jax
import jax.numpy as jnp
import numpy as np
from jax.experimental import pallas as pl
from jax.experimental.pallas import tpu as pltpu

_BLOCK_BYTES_TARGET = 4 * 1024 * 1024      # ~4 MiB input block (v6e/v7x sweet spot)
_LANE_TILE_TARGET = 2048                   # lanes per block (multiple of 128)
_VMEM_LIMIT_BYTES = 48 * 1024 * 1024       # explicit scoped budget (< v7x 64 MiB)


# ---------------------------------------------------------------------------
# Tiling helpers
# ---------------------------------------------------------------------------

def _row_unit(itemsize):
    # sublane packing: (8,128) f32, (16,128) bf16, (32,128) int8
    return max(8, 32 // int(itemsize))


def _pick_block(dim, unit, cap):
    """Block size along one axis.  Full extent if it fits the cap (always a
    legal block shape); otherwise the largest multiple of `unit` <= cap, with
    a ragged (masked) last block."""
    if dim <= cap:
        return dim
    return max(unit, (cap // unit) * unit)


def _tiles_for(rows, lanes, itemsize):
    elems_target = max(1024, _BLOCK_BYTES_TARGET // int(itemsize))
    unit = _row_unit(itemsize)
    l_blk = _pick_block(lanes, 128, min(_LANE_TILE_TARGET, elems_target))
    row_cap = max(unit, elems_target // max(l_blk, 1))
    r_blk = _pick_block(rows, unit, row_cap)
    return r_blk, l_blk, unit


def _split_for_two_cores(dim, blk, unit):
    """Cap the block so the axis gets >= 2 grid blocks (keeps both v7x
    TensorCores busy) whenever the axis is large enough to split."""
    if pl.cdiv(dim, blk) >= 2 or dim < 2 * unit:
        return blk
    return max(unit, ((dim // 2) // unit) * unit)


# ---------------------------------------------------------------------------
# Kernels
# ---------------------------------------------------------------------------

def _apply_kernel(x_ref, loc_ref, scale_ref, y_ref):
    # y = scale * (x + loc); loc/scale broadcast either per-row (R,1) or
    # per-lane (1,L).  Ragged output blocks are masked by Pallas on store.
    x = x_ref[...].astype(jnp.float32)
    y_ref[...] = (scale_ref[...] * (x + loc_ref[...])).astype(y_ref.dtype)


def _rowsum_kernel(x_ref, sum_ref, *, l_blk, lanes, ragged):
    # Per-row sum, accumulated across the (arbitrary) lane grid axis.
    @pl.when(pl.program_id(1) == 0)
    def _():
        sum_ref[...] = jnp.zeros_like(sum_ref)

    x = x_ref[...].astype(jnp.float32)
    if ragged:  # mask OOB lanes of the last ragged block (reads are not zero-padded)
        lane = pl.program_id(1) * l_blk + jax.lax.broadcasted_iota(
            jnp.int32, x.shape, 1)
        x = jnp.where(lane < lanes, x, 0.0)
    sum_ref[...] += jnp.sum(x, axis=1, keepdims=True)


def _rowcss_kernel(x_ref, mean_ref, css_ref, *, l_blk, lanes, ragged):
    # Per-row centered sum of squares (second pass of the stable init).
    @pl.when(pl.program_id(1) == 0)
    def _():
        css_ref[...] = jnp.zeros_like(css_ref)

    d = x_ref[...].astype(jnp.float32) - mean_ref[...]
    if ragged:
        lane = pl.program_id(1) * l_blk + jax.lax.broadcasted_iota(
            jnp.int32, d.shape, 1)
        d = jnp.where(lane < lanes, d, 0.0)
    css_ref[...] += jnp.sum(d * d, axis=1, keepdims=True)


# ---------------------------------------------------------------------------
# pallas_call wrappers
# ---------------------------------------------------------------------------

@functools.partial(jax.jit, static_argnames=("layout",))
def _actnorm_apply(x, loc_rows, scale_rows, layout):
    """x: (N, C, H, W).  loc_rows/scale_rows: (R,1) or (1,L) depending on layout."""
    N, C, H, W = x.shape
    if layout == "channel_rows":
        R, L = N * C, H * W
    else:  # batch_rows: lane-dense even when H*W is small / not a 128-multiple
        R, L = N, C * H * W
    x2d = x.reshape(R, L)                      # free, contiguity-preserving reshape

    itemsize = int(jnp.dtype(x.dtype).itemsize)
    r_blk, l_blk, unit = _tiles_for(R, L, itemsize)
    # Both grid axes are "parallel"; make sure at least one of them has >= 2 blocks.
    if pl.cdiv(R, r_blk) == 1 and pl.cdiv(L, l_blk) == 1:
        if R >= 2 * unit:
            r_blk = _split_for_two_cores(R, r_blk, unit)
        elif L >= 256:
            l_blk = _split_for_two_cores(L, l_blk, 128)
    grid = (pl.cdiv(R, r_blk), pl.cdiv(L, l_blk))

    if layout == "channel_rows":
        vec_spec = pl.BlockSpec((r_blk, 1), lambda i, j: (i, 0))
    else:
        vec_spec = pl.BlockSpec((1, l_blk), lambda i, j: (0, j))

    cost = pl.CostEstimate(flops=int(2 * R * L), transcendentals=0,
                           bytes_accessed=int(2 * R * L * itemsize))

    y2d = pl.pallas_call(
        _apply_kernel,
        out_shape=jax.ShapeDtypeStruct((R, L), x.dtype),
        grid=grid,
        in_specs=[
            pl.BlockSpec((r_blk, l_blk), lambda i, j: (i, j)),
            vec_spec,
            vec_spec,
        ],
        out_specs=pl.BlockSpec((r_blk, l_blk), lambda i, j: (i, j)),
        compiler_params=pltpu.CompilerParams(
            dimension_semantics=("parallel", "parallel"),
            vmem_limit_bytes=_VMEM_LIMIT_BYTES),
        cost_estimate=cost,
    )(x2d, loc_rows, scale_rows)
    return y2d.reshape(N, C, H, W)


def _row_reduce(kernel, x2d, extra_rows=None):
    """Streamed per-row reduction over (R, L): returns (R, 1) float32."""
    R, L = x2d.shape
    itemsize = int(jnp.dtype(x2d.dtype).itemsize)
    r_blk, l_blk, unit = _tiles_for(R, L, itemsize)
    r_blk = _split_for_two_cores(R, r_blk, unit)   # rows is the only parallel axis
    grid = (pl.cdiv(R, r_blk), pl.cdiv(L, l_blk))
    ragged = (L % l_blk) != 0
    body = functools.partial(kernel, l_blk=l_blk, lanes=L, ragged=ragged)

    in_specs = [pl.BlockSpec((r_blk, l_blk), lambda i, j: (i, j))]
    args = [x2d]
    if extra_rows is not None:
        in_specs.append(pl.BlockSpec((r_blk, 1), lambda i, j: (i, 0)))
        args.append(extra_rows)

    cost = pl.CostEstimate(flops=int(2 * R * L), transcendentals=0,
                           bytes_accessed=int(R * L * itemsize))

    return pl.pallas_call(
        body,
        out_shape=jax.ShapeDtypeStruct((R, 1), jnp.float32),
        grid=grid,
        in_specs=in_specs,
        out_specs=pl.BlockSpec((r_blk, 1), lambda i, j: (i, 0)),
        compiler_params=pltpu.CompilerParams(
            dimension_semantics=("parallel", "arbitrary"),
            vmem_limit_bytes=_VMEM_LIMIT_BYTES),
        cost_estimate=cost,
    )(*args)


# ---------------------------------------------------------------------------
# Module wrapper
# ---------------------------------------------------------------------------

class ActNorm:
    """JAX/Pallas port of the PyTorch ActNorm module (forward only)."""

    def __init__(self, in_channel):
        self.in_channel = in_channel
        self.loc = jnp.zeros((1, in_channel, 1, 1), jnp.float32)
        self.scale = jnp.ones((1, in_channel, 1, 1), jnp.float32)
        self.initialized = 0        # mirrors the uint8 buffer (Python-side, eager)
        self._row_cache = {}        # cached flattened loc/scale rows per layout

    # --- one-time data-dependent init (numerically stable, two passes) ------
    def _initialize(self, x):
        N, C, H, W = x.shape
        R, L = N * C, H * W
        x2d = x.reshape(R, L)
        n_elem = N * H * W

        row_sum = _row_reduce(_rowsum_kernel, x2d)                  # (R, 1) f32
        mean_c = row_sum.reshape(N, C).sum(axis=0) / n_elem         # (C,)
        mean_rows = jnp.tile(mean_c, (N,)).reshape(R, 1)            # row n*C+c -> mean[c]

        row_css = _row_reduce(_rowcss_kernel, x2d, mean_rows)       # (R, 1) f32
        var_c = row_css.reshape(N, C).sum(axis=0) / max(n_elem - 1, 1)  # ddof=1
        std_c = jnp.sqrt(jnp.maximum(var_c, 0.0))

        self.loc = (-mean_c).reshape(1, C, 1, 1)
        self.scale = (1.0 / (std_c + 1e-6)).reshape(1, C, 1, 1)
        self._row_cache = {}

    # --- cached, layout-aware loc/scale row vectors --------------------------
    def _loc_scale_rows(self, x):
        N, C, H, W = x.shape
        HW = H * W
        if HW >= 128 and HW % 128 == 0:
            layout, key = "channel_rows", ("cr", N)
        else:
            layout, key = "batch_rows", ("br", H, W)
        if key not in self._row_cache:
            loc_c = self.loc.reshape(C)
            scale_c = self.scale.reshape(C)
            if layout == "channel_rows":
                loc_rows = jnp.tile(loc_c, (N,)).reshape(N * C, 1)
                scale_rows = jnp.tile(scale_c, (N,)).reshape(N * C, 1)
            else:  # row n has layout [c0]*HW, [c1]*HW, ...
                loc_rows = jnp.repeat(loc_c, HW).reshape(1, C * HW)
                scale_rows = jnp.repeat(scale_c, HW).reshape(1, C * HW)
            self._row_cache[key] = (layout, loc_rows, scale_rows)
        return self._row_cache[key]

    def forward(self, x):
        N, C, H, W = x.shape
        assert C == self.in_channel
        if self.initialized == 0:
            # TODO(synk): data-dependent init branch lives outside jit, like the
            # eager PyTorch buffer check; it is not traceable under jax.jit/scan.
            self._initialize(x)
            self.initialized = 1
        layout, loc_rows, scale_rows = self._loc_scale_rows(x)
        return _actnorm_apply(x, loc_rows, scale_rows, layout)

    __call__ = forward


# ---------------------------------------------------------------------------
# Self-test
# ---------------------------------------------------------------------------

if __name__ == "__main__":
    def _ref_forward(xn):
        n, c, h, w = xn.shape
        flat = xn.transpose(1, 0, 2, 3).reshape(c, -1).astype(np.float64)
        mean = flat.mean(axis=1, keepdims=True)
        std = flat.std(axis=1, ddof=1, keepdims=True)
        out = (1.0 / (std + 1e-6)) * (flat - mean)
        return out.reshape(c, n, h, w).transpose(1, 0, 2, 3)

    key = jax.random.PRNGKey(0)

    # 1) Required small shape: (2, 4, 16, 16) -> channel_rows layout.
    N, C, H, W = 2, 4, 16, 16
    x = jax.random.normal(key, (N, C, H, W), dtype=jnp.float32) * 2.0 + 0.5
    model = ActNorm(C)
    y = jax.block_until_ready(model(x))            # init path: stats + apply
    y_ref = _ref_forward(np.asarray(x))
    np.testing.assert_allclose(np.asarray(y), y_ref, rtol=1e-4, atol=1e-4)

    y2 = jax.block_until_ready(model(x))           # steady-state (jitted, cached rows)
    np.testing.assert_allclose(np.asarray(y2), y_ref, rtol=1e-4, atol=1e-4)

    # bf16 apply path through the same (already initialized) model.
    yb = jax.block_until_ready(model(x.astype(jnp.bfloat16)))
    np.testing.assert_allclose(np.asarray(yb, dtype=np.float32), y_ref,
                               rtol=3e-2, atol=3e-2)

    # 2) Small-spatial shape (H*W = 64 < 128) -> batch_rows lane-dense layout.
    key2 = jax.random.fold_in(key, 1)
    x2 = jax.random.normal(key2, (2, 4, 8, 8), dtype=jnp.float32) - 0.25
    model2 = ActNorm(4)
    y3 = jax.block_until_ready(model2(x2))
    np.testing.assert_allclose(np.asarray(y3), _ref_forward(np.asarray(x2)),
                               rtol=1e-4, atol=1e-4)

    # 3) H*W = 2304 > lane tile -> ragged last lane block (masked stats path).
    key3 = jax.random.fold_in(key, 2)
    x3 = jax.random.normal(key3, (2, 4, 36, 64), dtype=jnp.float32) * 0.7 + 3.0
    model3 = ActNorm(4)
    y4 = jax.block_until_ready(model3(x3))
    np.testing.assert_allclose(np.asarray(y4), _ref_forward(np.asarray(x3)),
                               rtol=1e-4, atol=1e-4)

    print("KERNEL_OK")
</pallas_src>

<mosaic_0001>
module attributes {stable_mosaic.version = 11 : i64} {
  func.func @_rowsum_kernel(%arg0: i32, %arg1: i32, %arg2: memref<8x256xf32, #tpu.memory_space<vmem>>, %arg3: memref<8x1xf32, #tpu.memory_space<vmem>>) attributes {dimension_semantics = [#tpu.dimension_semantics<parallel>, #tpu.dimension_semantics<arbitrary>], iteration_bounds = array<i64: 1, 1>, scalar_prefetch = 0 : i64, scratch_operands = 0 : i64, tpu.core_type = #tpu.core_type<tc>, window_params = [{transform_indices = @transform_0, window_bounds = array<i64: 8, 256>}, {transform_indices = @transform_1, window_bounds = array<i64: 8, 1>}]} {
    %c0_i32 = arith.constant 0 : i32
    %0 = arith.cmpi eq, %arg1, %c0_i32 : i32
    %1 = arith.extui %0 : i1 to i32
    %c0_i32_0 = arith.constant 0 : i32
    %2 = arith.cmpi ne, %1, %c0_i32_0 : i32
    scf.if %2 {
      %cst_6 = arith.constant 0.000000e+00 : f32
      %9 = vector.broadcast %cst_6 : f32 to vector<8x1xf32>
      %c0_7 = arith.constant 0 : index
      %c0_8 = arith.constant 0 : index
      %10 = vector.load %arg3[%c0_7, %c0_8] : memref<8x1xf32, #tpu.memory_space<vmem>>, vector<8x1xf32>
      tpu.vector_store %arg3[%c0_7, %c0_8], %9 {strides = array<i32>} : memref<8x1xf32, #tpu.memory_space<vmem>>, vector<8x1xf32>,
    } else {
    }
    %c0 = arith.constant 0 : index
    %c0_1 = arith.constant 0 : index
    %3 = vector.load %arg2[%c0, %c0_1] : memref<8x256xf32, #tpu.memory_space<vmem>>, vector<8x256xf32>
    %c0_2 = arith.constant 0 : index
    %c0_3 = arith.constant 0 : index
    %4 = vector.load %arg3[%c0_2, %c0_3] : memref<8x1xf32, #tpu.memory_space<vmem>>, vector<8x1xf32>
    %cst = arith.constant dense<0.000000e+00> : vector<8xf32>
    %5 = vector.multi_reduction <add>, %3, %cst [1] : vector<8x256xf32> to vector<8xf32>
    %6 = vector.shape_cast %5 : vector<8xf32> to vector<8x1xf32>
    %7 = arith.addf %4, %6 : vector<8x1xf32>
    %c0_4 = arith.constant 0 : index
    %c0_5 = arith.constant 0 : index
    %8 = vector.load %arg3[%c0_4, %c0_5] : memref<8x1xf32, #tpu.memory_space<vmem>>, vector<8x1xf32>
    tpu.vector_store %arg3[%c0_4, %c0_5], %7 {strides = array<i32>} : memref<8x1xf32, #tpu.memory_space<vmem>>, vector<8x1xf32>,
    return
  }
  func.func @transform_0(%arg0: i32, %arg1: i32) -> (i32, i32) {
    %c0_i32 = arith.constant 0 : i32
    return %arg0, %arg1 : i32, i32
  }
  func.func @transform_1(%arg0: i32, %arg1: i32) -> (i32, i32) {
    %c0_i32 = arith.constant 0 : i32
    %c0_i32_0 = arith.constant 0 : i32
    return %arg0, %c0_i32 : i32, i32
  }
}

</mosaic_0001>

<llo_original>
// kernel: tpu_custom_call.1
$region0: #{tpu_custom_call.1}
  #allocation0 [shape = 'u32[]', space=smem, size = 0x4, offset = 0x4, fixed_abs, tag = 'smem constant byte address 0x4 - core index']
  #allocation1 [shape = 'u32[144,128]{1,0:T(1,128)}', space=vmem, size = 0x12000, scoped, tag = 'internal scratch']
  %s0 = inlined_call_operand.hbm [shape: f32[8,256], index: 0, kind: input, shape index: {}]
  %s1 = inlined_call_operand.vmem [shape: f32[8,1], index: 1, kind: output, shape index: {}]
  %s2 = sld [smem:[#allocation0]]
  $region22: #{tpu_custom_call.1} parent=0
    _
  %s4 = ssub.s32 1, %s2
  %s5 = scalar_select 0, %s4, %s2
  $region1: #{tpu_custom_call.1} parent=0
    #allocation2 [shape = 'u8[8192]{0}', space=vmem, size = 0x2000, scoped, tag = 'input window, operand 0, single buffered']
    #allocation3 [shape = 's32[1]{0}', space=sflag, size = 0x4, scoped, tag = 'scoped memory for tpu_custom_call.1']
    %6 = vsyncpa [#allocation3], 0
    // Predicated region
    $region2: #{tpu_custom_call.1} parent=1 // pred_check
      _
    $region3: #{tpu_custom_call.1} parent=1 // pred_check_branch
      %8 = sbr.rel (0) target = $region5
    $region4: #{tpu_custom_call.1} parent=1 // pred_region
      %s10 = ssub.s32 256, 256
      %11 = vsyncadd [#allocation3], %s10
      %s13 = sshll.u32 [#allocation2], 4
      %s14 = int_to_ptr.vmem [resolvable:$true] %s13
      %16 = dma.hbm_to_vmem [thread:$0]  %s0, 256, %s14, [#allocation3]
    $region5: #{tpu_custom_call.1} parent=1 // pred_fallthru
      _
    // Predicated region
    $region6: #{tpu_custom_call.1} parent=1 // pred_check
      _
    $region7: #{tpu_custom_call.1} parent=1 // pred_check_branch
      %18 = sbr.rel (0) target = $region9
    $region8: #{tpu_custom_call.1} parent=1 // pred_region
      %19 = dma.done [#allocation3], 256
    $region9: #{tpu_custom_call.1} parent=1 // pred_fallthru
      _
    %p20 = scmp.eq.s32.totalorder 0, 0
    // Predicated region
    $region10: #{tpu_custom_call.1} parent=1 // pred_check
      %p21 = pneg %p20
    $region11: #{tpu_custom_call.1} parent=1 // pred_check_branch
      %23 = sbr.rel (%p21) target = $region13
    $region12: #{tpu_custom_call.1} parent=1 // pred_region
      %vm24 = vcmask 7168
      %25 = vst.msk [vmem:[%s1] sm:$0xff] %vm24, 0.0
    $region13: #{tpu_custom_call.1} parent=1 // pred_fallthru
      _
    %v26 = vld [vmem:[#allocation2] sm:$0xff]
    %v27 = vld [vmem:[#allocation2 + $0x8] sm:$0xff]
    %v28 = vld [vmem:[%s1] sm:$0xff]
    %v29 = vadd.f32 %v26, %v27
    %30 = vadd.xlane.f32.xlu0 %v29
    %v31 = vpop.xlane.xlu0 %30
    %v32 = vadd.f32 %v28, %v31
    %vm33 = vcmask 7168
    %34 = vst.msk [vmem:[%s1] sm:$0xff] %vm33, %v32
    // Predicated region
    $region14: #{tpu_custom_call.1} parent=1 // pred_check
      _
    $region15: #{tpu_custom_call.1} parent=1 // pred_check_branch
      %36 = sbr.rel (0) target = $region17
    $region16: #{tpu_custom_call.1} parent=1 // pred_region
      _
    $region17: #{tpu_custom_call.1} parent=1 // pred_fallthru
      _
    // Predicated region
    $region18: #{tpu_custom_call.1} parent=1 // pred_check
      _
    $region19: #{tpu_custom_call.1} parent=1 // pred_check_branch
      %38 = sbr.rel (0) target = $region21
    $region20: #{tpu_custom_call.1} parent=1 // pred_region
      _
    $region21: #{tpu_custom_call.1} parent=1 // pred_fallthru
      _
    %39 = vsyncpa [#allocation3], 1

</llo_original>
